<compile_context>
chip_gen: v7x
topology: tpu7x:2x2x1
jax: 0.10.0
libtpu: 0.0.40
codegen_flags: <defaults>
</compile_context>

<pallas_src>
import jax
import jax.numpy as jnp
from jax import lax
from jax.experimental import pallas as pl
from jax.experimental.pallas import tpu as pltpu


def ema_chunk_kernel(w_ref, c_ref, x_ref, h0_ref, out_ref, h_scr):
    # w_ref:   (Tc, Tc) lower-triangular EMA weights      (VMEM)
    # c_ref:   (Tc, 1)  decay applied to incoming hidden  (VMEM)
    # x_ref:   (Tc, Dt) input chunk                       (VMEM)
    # h0_ref:  (1,  Dt) initial hidden state              (VMEM)
    # out_ref: (Tc, Dt) output chunk                      (VMEM)
    # h_scr:   (1,  Dt) hidden state carried across T chunks (VMEM scratch)
    @pl.when(pl.program_id(2) == 0)
    def _():
        h_scr[...] = h0_ref[...]

    tc = x_ref.shape[0]
    y = jnp.dot(
        w_ref[...], x_ref[...],
        preferred_element_type=jnp.float32,
        precision=lax.Precision.HIGHEST,
    )
    y = y + c_ref[...] * h_scr[...]        # (Tc,1) * (1,Dt) -> (Tc,Dt)
    out_ref[...] = y
    h_scr[...] = y[tc - 1:tc, :]           # last timestep -> carry for next chunk


def _pick_tile(n, target, align):
    """Largest tile <= target that divides n and is a multiple of `align`;
    falls back to n itself (full dim) if none exists or n <= target."""
    if n <= target:
        return n
    t = (target // align) * align
    while t >= align:
        if n % t == 0:
            return t
        t -= align
    return n


def ema_recurrent(x, hidden, alpha=0.4, *, t_chunk=64, d_tile=4096):
    """x: (B, T, D) f32, hidden: (B, 1, D) f32 -> (B, T, D) f32."""
    B, T, D = x.shape
    x = x.astype(jnp.float32)
    hidden = hidden.astype(jnp.float32)

    tc = _pick_tile(T, t_chunk, 8)     # time-chunk (sublane axis of blocks)
    dt = _pick_tile(D, d_tile, 128)    # feature tile (lane axis of blocks)

    # Host-side (tiny) EMA transfer matrices: fold |alpha| into W and c.
    a = jnp.abs(jnp.asarray(alpha, dtype=jnp.float32)).reshape(())
    r = 1.0 - a
    ii = jnp.arange(tc)[:, None]
    jj = jnp.arange(tc)[None, :]
    expo = jnp.where(jj <= ii, (ii - jj).astype(jnp.float32), 0.0)
    w = jnp.where(jj <= ii, a * jnp.power(r, expo), 0.0).astype(jnp.float32)   # (Tc, Tc)
    c = jnp.power(r, jnp.arange(1, tc + 1, dtype=jnp.float32))[:, None]        # (Tc, 1)

    grid = (B, D // dt, T // tc)

    out = pl.pallas_call(
        ema_chunk_kernel,
        out_shape=jax.ShapeDtypeStruct((B, T, D), jnp.float32),
        grid_spec=pltpu.PrefetchScalarGridSpec(
            num_scalar_prefetch=0,
            grid=grid,
            in_specs=[
                pl.BlockSpec((tc, tc), lambda b, d, t: (0, 0)),            # W (resident)
                pl.BlockSpec((tc, 1), lambda b, d, t: (0, 0)),             # c (resident)
                pl.BlockSpec((None, tc, dt), lambda b, d, t: (b, t, d)),   # x
                pl.BlockSpec((None, 1, dt), lambda b, d, t: (b, 0, d)),    # hidden
            ],
            out_specs=pl.BlockSpec((None, tc, dt), lambda b, d, t: (b, t, d)),
            scratch_shapes=[pltpu.VMEM((1, dt), jnp.float32)],
        ),
        compiler_params=pltpu.CompilerParams(
            dimension_semantics=("parallel", "parallel", "arbitrary"),
            vmem_limit_bytes=48 * 1024 * 1024,
        ),
    )(w, c, x, hidden)
    return out


def ema_recurrent_ref(x, hidden, alpha=0.4):
    """Pure-JAX reference matching the PyTorch module."""
    a = jnp.abs(jnp.float32(alpha))
    h0 = hidden[:, 0, :].astype(jnp.float32)

    def step(h, xt):
        h_new = a * xt + (1.0 - a) * h
        return h_new, h_new

    _, out = lax.scan(step, h0, jnp.transpose(x.astype(jnp.float32), (1, 0, 2)))
    return jnp.transpose(out, (1, 0, 2))


if __name__ == "__main__":
    key = jax.random.PRNGKey(0)
    k1, k2, k3, k4 = jax.random.split(key, 4)

    # Small shape consistent with the module: batch=2, seq=8, hidden=32.
    B, T, D = 2, 8, 32
    x = jax.random.normal(k1, (B, T, D), dtype=jnp.float32)
    hidden = jax.random.normal(k2, (B, 1, D), dtype=jnp.float32)

    out = jax.block_until_ready(ema_recurrent(x, hidden, alpha=0.4))
    ref = ema_recurrent_ref(x, hidden, alpha=0.4)
    assert out.shape == (B, T, D), out.shape
    assert jnp.allclose(out, ref, atol=1e-5, rtol=1e-5), "mismatch vs reference"

    # Second (still small) shape that exercises multiple T chunks / D tiles and
    # the VMEM-carried hidden state across chunks.
    B2, T2, D2 = 2, 32, 256
    x2 = jax.random.normal(k3, (B2, T2, D2), dtype=jnp.float32)
    h2 = jax.random.normal(k4, (B2, 1, D2), dtype=jnp.float32)

    out2 = jax.block_until_ready(ema_recurrent(x2, h2, alpha=0.4, t_chunk=8, d_tile=128))
    ref2 = ema_recurrent_ref(x2, h2, alpha=0.4)
    assert out2.shape == (B2, T2, D2), out2.shape
    assert jnp.allclose(out2, ref2, atol=1e-5, rtol=1e-5), "mismatch vs reference (chunked)"

    print("KERNEL_OK")
</pallas_src>

<mosaic_0001>
module attributes {stable_mosaic.version = 11 : i64} {
  func.func @ema_chunk_kernel(%arg0: i32, %arg1: i32, %arg2: i32, %arg3: memref<8x8xf32, #tpu.memory_space<vmem>>, %arg4: memref<8x1xf32, #tpu.memory_space<vmem>>, %arg5: memref<1x8x32xf32, #tpu.memory_space<vmem>>, %arg6: memref<1x1x32xf32, #tpu.memory_space<vmem>>, %arg7: memref<1x8x32xf32, #tpu.memory_space<vmem>>, %arg8: memref<1x32xf32, #tpu.memory_space<vmem>>) attributes {dimension_semantics = [#tpu.dimension_semantics<parallel>, #tpu.dimension_semantics<parallel>, #tpu.dimension_semantics<arbitrary>], iteration_bounds = array<i64: 2, 1, 1>, scalar_prefetch = 0 : i64, scratch_operands = 1 : i64, tpu.core_type = #tpu.core_type<tc>, window_params = [{pipeline_mode = #tpu.pipeline_mode<synchronous>, transform_indices = @transform_0, window_bounds = array<i64: 8, 8>}, {pipeline_mode = #tpu.pipeline_mode<synchronous>, transform_indices = @transform_1, window_bounds = array<i64: 8, 1>}, {transform_indices = @transform_2, window_bounds = array<i64: 1, 8, 32>}, {transform_indices = @transform_3, window_bounds = array<i64: 1, 1, 32>}, {transform_indices = @transform_4, window_bounds = array<i64: 1, 8, 32>}]} {
    %c0_i32 = arith.constant 0 : i32
    %0 = arith.cmpi eq, %arg2, %c0_i32 : i32
    %1 = arith.extui %0 : i1 to i32
    %c0_i32_0 = arith.constant 0 : i32
    %2 = arith.cmpi ne, %1, %c0_i32_0 : i32
    scf.if %2 {
      %c0_14 = arith.constant 0 : index
      %c0_15 = arith.constant 0 : index
      %c0_16 = arith.constant 0 : index
      %18 = vector.load %arg6[%c0_14, %c0_15, %c0_16] : memref<1x1x32xf32, #tpu.memory_space<vmem>>, vector<1x1x32xf32>
      %19 = vector.shape_cast %18 : vector<1x1x32xf32> to vector<1x32xf32>
      %c0_17 = arith.constant 0 : index
      %c0_18 = arith.constant 0 : index
      %20 = vector.load %arg8[%c0_17, %c0_18] : memref<1x32xf32, #tpu.memory_space<vmem>>, vector<1x32xf32>
      tpu.vector_store %arg8[%c0_17, %c0_18], %19 {strides = array<i32>} : memref<1x32xf32, #tpu.memory_space<vmem>>, vector<1x32xf32>,
    } else {
    }
    %c0 = arith.constant 0 : index
    %c0_1 = arith.constant 0 : index
    %3 = vector.load %arg3[%c0, %c0_1] : memref<8x8xf32, #tpu.memory_space<vmem>>, vector<8x8xf32>
    %c0_2 = arith.constant 0 : index
    %c0_3 = arith.constant 0 : index
    %c0_4 = arith.constant 0 : index
    %4 = vector.load %arg5[%c0_2, %c0_3, %c0_4] : memref<1x8x32xf32, #tpu.memory_space<vmem>>, vector<1x8x32xf32>
    %5 = vector.shape_cast %4 : vector<1x8x32xf32> to vector<8x32xf32>
    %cst = arith.constant dense<0.000000e+00> : vector<8x32xf32>
    %6 = tpu.matmul %3, %5, %cst {dimension_numbers = #tpu.dot_dimension_numbers<[1], [0], [0], [1], [0, 0, 1, 1], [], []>, precision = #tpu.contract_precision<fp32>} : vector<8x8xf32>, vector<8x32xf32>, vector<8x32xf32> -> vector<8x32xf32>
    %c0_5 = arith.constant 0 : index
    %c0_6 = arith.constant 0 : index
    %7 = vector.load %arg4[%c0_5, %c0_6] : memref<8x1xf32, #tpu.memory_space<vmem>>, vector<8x1xf32>
    %c0_7 = arith.constant 0 : index
    %c0_8 = arith.constant 0 : index
    %8 = vector.load %arg8[%c0_7, %c0_8] : memref<1x32xf32, #tpu.memory_space<vmem>>, vector<1x32xf32>
    %9 = vector.broadcast %7 : vector<8x1xf32> to vector<8x32xf32>
    %10 = vector.broadcast %8 : vector<1x32xf32> to vector<8x32xf32>
    %11 = arith.mulf %9, %10 : vector<8x32xf32>
    %12 = arith.addf %6, %11 : vector<8x32xf32>
    %c0_9 = arith.constant 0 : index
    %c0_10 = arith.constant 0 : index
    %c0_11 = arith.constant 0 : index
    %13 = vector.load %arg7[%c0_9, %c0_10, %c0_11] : memref<1x8x32xf32, #tpu.memory_space<vmem>>, vector<1x8x32xf32>
    %14 = vector.shape_cast %13 : vector<1x8x32xf32> to vector<8x32xf32>
    %15 = vector.shape_cast %12 : vector<8x32xf32> to vector<1x8x32xf32>
    tpu.vector_store %arg7[%c0_9, %c0_10, %c0_11], %15 {strides = array<i32>} : memref<1x8x32xf32, #tpu.memory_space<vmem>>, vector<1x8x32xf32>,
    %16 = vector.extract_strided_slice %12 {offsets = [7, 0], sizes = [1, 32], strides = [1, 1]} : vector<8x32xf32> to vector<1x32xf32>
    %c0_12 = arith.constant 0 : index
    %c0_13 = arith.constant 0 : index
    %17 = vector.load %arg8[%c0_12, %c0_13] : memref<1x32xf32, #tpu.memory_space<vmem>>, vector<1x32xf32>
    tpu.vector_store %arg8[%c0_12, %c0_13], %16 {strides = array<i32>} : memref<1x32xf32, #tpu.memory_space<vmem>>, vector<1x32xf32>,
    return
  }
  func.func @transform_0(%arg0: i32, %arg1: i32, %arg2: i32) -> (i32, i32) {
    %c0_i32 = arith.constant 0 : i32
    %c0_i32_0 = arith.constant 0 : i32
    %c0_i32_1 = arith.constant 0 : i32
    return %c0_i32, %c0_i32_0 : i32, i32
  }
  func.func @transform_1(%arg0: i32, %arg1: i32, %arg2: i32) -> (i32, i32) {
    %c0_i32 = arith.constant 0 : i32
    %c0_i32_0 = arith.constant 0 : i32
    %c0_i32_1 = arith.constant 0 : i32
    return %c0_i32, %c0_i32_0 : i32, i32
  }
  func.func @transform_2(%arg0: i32, %arg1: i32, %arg2: i32) -> (i32, i32, i32) {
    %c0_i32 = arith.constant 0 : i32
    return %arg0, %arg2, %arg1 : i32, i32, i32
  }
  func.func @transform_3(%arg0: i32, %arg1: i32, %arg2: i32) -> (i32, i32, i32) {
    %c0_i32 = arith.constant 0 : i32
    %c0_i32_0 = arith.constant 0 : i32
    return %arg0, %c0_i32, %arg1 : i32, i32, i32
  }
  func.func @transform_4(%arg0: i32, %arg1: i32, %arg2: i32) -> (i32, i32, i32) {
    %c0_i32 = arith.constant 0 : i32
    return %arg0, %arg2, %arg1 : i32, i32, i32
  }
}

</mosaic_0001>

<llo_original>
// kernel: tpu_custom_call.1
$region0: #{tpu_custom_call.1}
  #allocation0 [shape = 'u32[]', space=smem, size = 0x4, offset = 0x4, fixed_abs, tag = 'smem constant byte address 0x4 - core index']
  #allocation1 [shape = 'u32[144,128]{1,0:T(1,128)}', space=vmem, size = 0x12000, scoped, tag = 'internal scratch']
  #allocation2 [shape = 'f32[1,32]{1,0:T(1,128)}', space=vmem, size = 0x200, scoped, tag = 'scratch operand']
  %s0 = inlined_call_operand.hbm [shape: f32[8,8], index: 0, kind: input, shape index: {}]
  %s1 = inlined_call_operand.vmem [shape: f32[8,1], index: 1, kind: input, shape index: {}]
  %s2 = inlined_call_operand.vmem [shape: f32[2,8,32], index: 2, kind: input, shape index: {}]
  %s3 = inlined_call_operand.vmem [shape: f32[2,1,32], index: 3, kind: input, shape index: {}]
  %s4 = inlined_call_operand.hbm [shape: f32[2,8,32], index: 4, kind: output, shape index: {}]
  %s5 = sld [smem:[#allocation0]]
  $region57: #{tpu_custom_call.1} parent=0
    _
  %s7 = ssub.s32 1, %s5
  %s8 = scalar_select 0, %s7, %s5
  $region1: #{tpu_custom_call.1} parent=0
    #allocation3 [shape = 'u8[4096]{0}', space=vmem, size = 0x1000, scoped, tag = 'input window, operand 0, single buffered']
    #allocation4 [shape = 's32[2]{0}', space=sflag, size = 0x8, scoped, tag = 'scoped memory for tpu_custom_call.1']
    #allocation5 [shape = 's32[2]{0}', space=sflag, size = 0x8, scoped, tag = 'scoped memory for tpu_custom_call.1']
    #allocation6 [shape = 'u8[8192]{0}', space=vmem, size = 0x2000, scoped, tag = 'output window, operand 0']
    %9 = vsyncpa [#allocation4], 0
    %10 = vsyncpa [#allocation5], 0
    %s11 = scalar_lea.sflag [#allocation5], 1
    %12 = vsyncpa %s11, 0
    loop: start=0, step=1, limit=4
    $region2: #{tpu_custom_call.1} parent=1 // loop_pre_header
      _
    $region3: #{tpu_custom_call.1} parent=1 // loop_header
      %s14 = sphi 0, %s18
      %p15 = scmp.ge.s32.totalorder %s14, 4
      %s21 = sphi 0, %s40
      %s22 = sphi 0, %s36
      %s23 = sphi 0, %s32
      %s24 = sphi 0, %s21
      %s25 = sphi 0, %s22
      %s26 = sphi 0, %s23
      %s27 = sphi 0, %s24
      %s28 = sphi 0, %s25
      %s29 = sphi 0, %s26
      %s41 = sphi 0, %s41
      %s43 = sphi 0, %s41
      %s44 = sphi 0, %s43
      %s58 = sphi 0, %s44
      %s62 = sphi 0, %s62
      %s64 = sphi 0, %s62
      %s65 = sphi 0, %s64
      %s79 = sphi 0, %s65
      %s89 = sphi 0, %s91
      %s92 = sphi 0, %s89
      %s93 = sphi 0, %s92
      %s109 = sphi 0, %s93
      %s117 = sphi 0, %s119
      %s120 = sphi 0, %s117
      %s121 = sphi 0, %s120
      %s137 = sphi 0, %s121
      %s147 = sphi 0, %s149
      %s150 = sphi 0, %s147
      %s151 = sphi 0, %s150
      %s167 = sphi 0, %s151
    $region4: #{tpu_custom_call.1} parent=1 // loop_header_branch
      %17 = sbr.rel (%p15) target = $region8
    $region5: #{tpu_custom_call.1} parent=1 // loop_body
      %s19 = ssub.s32 %s14, 1
      %s20 = ssub.s32 %s14, 2
      %s30 = sadd.s32 1, %s23
      %p31 = scmp.ge.s32.totalorder %s30, 1
      %s32 = scalar_select %p31, 0, %s30
      %s33 = sadd.s32 1, %s22
      %s34 = scalar_select %p31, %s33, %s22
      %p35 = scmp.ge.s32.totalorder %s34, 1
      %s36 = scalar_select %p35, 0, %s34
      %s37 = sadd.s32 1, %s21
      %s38 = scalar_select %p35, %s37, %s21
      %p39 = scmp.ge.s32.totalorder %s38, 2
      %s40 = scalar_select %p39, 0, %s38
      %s42 = sadd.s32 %s41, 1
      %p45 = scmp.eq.s32.totalorder %s14, 1
      %p46 = scmp.ne.s32.totalorder %s41, %s43
      %p47 = scmp.eq.s32.totalorder %s14, 0
      %p48 = por %p46, %p47
      %p49 = scmp.ne.s32.totalorder %s41, %s43
      %p50 = scmp.eq.s32.totalorder %s19, 1
      %p51 = por %p49, %p50
      %p52 = scmp.ne.s32.totalorder %s43, %s44
      %p53 = scmp.eq.s32.totalorder %s19, 0
      %p54 = por %p52, %p53
      %p55 = scmp.ne.s32.totalorder %s43, %s44
      %p56 = scmp.eq.s32.totalorder %s20, 1
      %p57 = por %p55, %p56
      %p59 = scmp.ne.s32.totalorder %s44, %s58
      %p60 = scmp.eq.s32.totalorder %s20, 0
      %p61 = por %p59, %p60
      %s63 = sadd.s32 %s62, 1
      %p66 = scmp.eq.s32.totalorder %s14, 1
      %p67 = scmp.ne.s32.totalorder %s62, %s64
      %p68 = scmp.eq.s32.totalorder %s14, 0
      %p69 = por %p67, %p68
      %p70 = scmp.ne.s32.totalorder %s62, %s64
      %p71 = scmp.eq.s32.totalorder %s19, 1
      %p72 = por %p70, %p71
      %p73 = scmp.ne.s32.totalorder %s64, %s65
      %p74 = scmp.eq.s32.totalorder %s19, 0
      %p75 = por %p73, %p74
      %p76 = scmp.ne.s32.totalorder %s64, %s65
      %p77 = scmp.eq.s32.totalorder %s20, 1
      %p78 = por %p76, %p77
      %p80 = scmp.ne.s32.totalorder %s65, %s79
      %p81 = scmp.eq.s32.totalorder %s20, 0
      %p82 = por %p80, %p81
      %s83 = ssub.s32 %s21, %s40
      %s84 = ssub.s32 %s23, %s32
      %s85 = sor.u32 %s83, %s84
      %s86 = ssub.s32 %s22, %s36
      %s87 = sor.u32 %s85, %s86
      %p88 = scmp.eq.s32.totalorder %s87, 0
      %s90 = sadd.s32 %s89, 1
      %s91 = scalar_select %p88, %s89, %s90
      %p94 = pneg %p88
      %p95 = scmp.eq.s32.totalorder %s14, 1
      %p96 = por %p94, %p95
      %p97 = scmp.ne.s32.totalorder %s89, %s92
      %p98 = scmp.eq.s32.totalorder %s14, 0
      %p99 = por %p97, %p98
      %p100 = scmp.ne.s32.totalorder %s89, %s92
      %p101 = scmp.eq.s32.totalorder %s19, 1
      %p102 = por %p100, %p101
      %p103 = scmp.ne.s32.totalorder %s92, %s93
      %p104 = scmp.eq.s32.totalorder %s19, 0
      %p105 = por %p103, %p104
      %p106 = scmp.ne.s32.totalorder %s92, %s93
      %p107 = scmp.eq.s32.totalorder %s20, 1
      %p108 = por %p106, %p107
      %p110 = scmp.ne.s32.totalorder %s93, %s109
      %p111 = scmp.eq.s32.totalorder %s20, 0
      %p112 = por %p110, %p111
      %s113 = ssub.s32 %s21, %s40
      %s114 = ssub.s32 %s22, %s36
      %s115 = sor.u32 %s113, %s114
      %p116 = scmp.eq.s32.totalorder %s115, 0
      %s118 = sadd.s32 %s117, 1
      %s119 = scalar_select %p116, %s117, %s118
      %p122 = pneg %p116
      %p123 = scmp.eq.s32.totalorder %s14, 1
      %p124 = por %p122, %p123
      %p125 = scmp.ne.s32.totalorder %s117, %s120
      %p126 = scmp.eq.s32.totalorder %s14, 0
      %p127 = por %p125, %p126
      %p128 = scmp.ne.s32.totalorder %s117, %s120
      %p129 = scmp.eq.s32.totalorder %s19, 1
      %p130 = por %p128, %p129
      %p131 = scmp.ne.s32.totalorder %s120, %s121
      %p132 = scmp.eq.s32.totalorder %s19, 0
      %p133 = por %p131, %p132
      %p134 = scmp.ne.s32.totalorder %s120, %s121
      %p135 = scmp.eq.s32.totalorder %s20, 1
      %p136 = por %p134, %p135
      %p138 = scmp.ne.s32.totalorder %s121, %s137
      %p139 = scmp.eq.s32.totalorder %s20, 0
      %p140 = por %p138, %p139
      %s141 = ssub.s32 %s21, %s40
      %s142 = ssub.s32 %s23, %s32
      %s143 = sor.u32 %s141, %s142
      %s144 = ssub.s32 %s22, %s36
      %s145 = sor.u32 %s143, %s144
      %p146 = scmp.eq.s32.totalorder %s145, 0
      %s148 = sadd.s32 %s147, 1
      %s149 = scalar_select %p146, %s147, %s148
      %p152 = pneg %p146
      %p153 = scmp.eq.s32.totalorder %s14, 1
      %p154 = por %p152, %p153
      %p155 = scmp.ne.s32.totalorder %s147, %s150
      %p156 = scmp.eq.s32.totalorder %s14, 0
      %p157 = por %p155, %p156
      %p158 = scmp.ne.s32.totalorder %s147, %s150
      %p159 = scmp.eq.s32.totalorder %s19, 1
      %p160 = por %p158, %p159
      %p161 = scmp.ne.s32.totalorder %s150, %s151
      %p162 = scmp.eq.s32.totalorder %s19, 0
      %p163 = por %p161, %p162
      %p164 = scmp.ne.s32.totalorder %s150, %s151
      %p165 = scmp.eq.s32.totalorder %s20, 1
      %p166 = por %p164, %p165
      %p168 = scmp.ne.s32.totalorder %s151, %s167
      %p169 = scmp.eq.s32.totalorder %s20, 0
      %p170 = por %p168, %p169
      %p171 = scmp.le.s32.totalorder 1, %s14
      %p172 = scmp.lt.s32.totalorder %s14, 3
      %p173 = pnand %p171, %p172
      %p174 = pneg %p173
      // Predicated region
      $region9: #{tpu_custom_call.1} parent=5 // pred_check
        _
      $region10: #{tpu_custom_call.1} parent=5 // pred_check_branch
        %176 = sbr.rel (%p173) target = $region12
      $region11: #{tpu_custom_call.1} parent=5 // pred_region
        %s177 = ssub.s32 %s14, 1
        // Predicated region
        $region13: #{tpu_custom_call.1} parent=11 // pred_check
          %p178 = pneg %p54
        $region14: #{tpu_custom_call.1} parent=11 // pred_check_branch
          %180 = sbr.rel (%p178) target = $region16
        $region15: #{tpu_custom_call.1} parent=11 // pred_region
          %s182 = ssub.s32 128, 128
          %183 = vsyncadd [#allocation4], %s182
          %s185 = sshll.u32 [#allocation3], 4
          %s186 = int_to_ptr.vmem [resolvable:$true] %s185
          %188 = dma.hbm_to_vmem [thread:$0]  %s0, 128, %s186, [#allocation4]
        $region16: #{tpu_custom_call.1} parent=11 // pred_fallthru
          _
        // Predicated region
        $region17: #{tpu_custom_call.1} parent=11 // pred_check
          %p189 = pneg %p75
        $region18: #{tpu_custom_call.1} parent=11 // pred_check_branch
          %191 = sbr.rel (%p189) target = $region20
        $region19: #{tpu_custom_call.1} parent=11 // pred_region
          _
        $region20: #{tpu_custom_call.1} parent=11 // pred_fallthru
          _
      $region12: #{tpu_custom_call.1} parent=5 // pred_fallthru
        _
      %p192 = scmp.lt.s32.totalorder %s14, 2
      // Predicated region
      $region21: #{tpu_custom_call.1} parent=5 // pred_check
        %p193 = pneg %p192
      $region22: #{tpu_custom_call.1} parent=5 // pred_check_branch
        %195 = sbr.rel (%p193) target = $region24
      $region23: #{tpu_custom_call.1} parent=5 // pred_region
        // Predicated region
        $region25: #{tpu_custom_call.1} parent=23 // pred_check
          %p196 = pneg %p99
        $region26: #{tpu_custom_call.1} parent=23 // pred_check_branch
          %198 = sbr.rel (%p196) target = $region28
        $region27: #{tpu_custom_call.1} parent=23 // pred_region
          %p199 = scmp.lt.s32.totalorder %s21, 1
          %s200 = scalar_select %p199, %s21, 1
          %p201 = scmp.lt.s32.totalorder %s23, 0
          %s202 = scalar_select %p201, %s23, 0
          %p203 = scmp.lt.s32.totalorder %s22, 0
          %s204 = scalar_select %p203, %s22, 0
          %s205 = sadd.s32 %s204, %s202
          %s206 = sadd.s32 %s205, %s200
          %s207 = smul.addr %s206, 8
          %s208 = scalar_lea.vmem %s2, %s207
        $region28: #{tpu_custom_call.1} parent=23 // pred_fallthru
          _
        // Predicated region
        $region29: #{tpu_custom_call.1} parent=23 // pred_check
          %p209 = pneg %p127
        $region30: #{tpu_custom_call.1} parent=23 // pred_check_branch
          %211 = sbr.rel (%p209) target = $region32
        $region31: #{tpu_custom_call.1} parent=23 // pred_region
          %p212 = scmp.lt.s32.totalorder %s21, 1
          %s213 = scalar_select %p212, %s21, 1
          %p214 = scmp.lt.s32.totalorder %s22, 0
          %s215 = scalar_select %p214, %s22, 0
          %s216 = sadd.s32 %s215, %s213
          %s217 = scalar_lea.vmem %s3, %s216
        $region32: #{tpu_custom_call.1} parent=23 // pred_fallthru
          _
      $region24: #{tpu_custom_call.1} parent=5 // pred_fallthru
        _
      %p218 = scmp.le.s32.totalorder 1, %s14
      %p219 = scmp.lt.s32.totalorder %s14, 3
      %p220 = pnand %p218, %p219
      %p221 = pneg %p220
      // Predicated region
      $region33: #{tpu_custom_call.1} parent=5 // pred_check
        _
      $region34: #{tpu_custom_call.1} parent=5 // pred_check_branch
        %223 = sbr.rel (%p220) target = $region36
      $region35: #{tpu_custom_call.1} parent=5 // pred_region
        %s224 = ssub.s32 %s14, 1
        // Predicated region
        $region37: #{tpu_custom_call.1} parent=35 // pred_check
          %p225 = pneg %p54
        $region38: #{tpu_custom_call.1} parent=35 // pred_check_branch
          %227 = sbr.rel (%p225) target = $region40
        $region39: #{tpu_custom_call.1} parent=35 // pred_region
          %228 = dma.done [#allocation4], 128
        $region40: #{tpu_custom_call.1} parent=35 // pred_fallthru
          _
        %p229 = pneg %p54
        %p230 = pneg %p51
        %p231 = pneg %p75
        %p232 = pneg %p72
        %p233 = scmp.lt.s32.totalorder %s24, 1
        %s234 = scalar_select %p233, %s24, 1
        %p235 = scmp.lt.s32.totalorder %s26, 0
        %s236 = scalar_select %p235, %s26, 0
        %p237 = scmp.lt.s32.totalorder %s25, 0
        %s238 = scalar_select %p237, %s25, 0
        %s239 = sadd.s32 %s238, %s236
        %s240 = sadd.s32 %s239, %s234
        %s241 = smul.addr %s240, 8
        %s242 = scalar_lea.vmem %s2, %s241
        %p243 = pneg %p105
        %p244 = pneg %p102
        %p245 = scmp.lt.s32.totalorder %s24, 1
        %s246 = scalar_select %p245, %s24, 1
        %p247 = scmp.lt.s32.totalorder %s25, 0
        %s248 = scalar_select %p247, %s25, 0
        %s249 = sadd.s32 %s248, %s246
        %s250 = scalar_lea.vmem %s3, %s249
        %p251 = pneg %p133
        %p252 = pneg %p130
        %p253 = pneg %p163
        %p254 = pneg %p160
        %s255 = sand.u32 %s150, 1
        %s256 = scalar_lea.sflag [#allocation5], %s255
        %s257 = sand.u32 %s150, 1
        %s258 = smul.addr %s257, 8
        %s259 = scalar_lea.vmem [#allocation6], %s258
        %p260 = scmp.lt.s32.totalorder %s24, 1
        %s261 = scalar_select %p260, %s24, 1
        %p262 = scmp.lt.s32.totalorder %s26, 0
        %s263 = scalar_select %p262, %s26, 0
        %p264 = scmp.lt.s32.totalorder %s25, 0
        %s265 = scalar_select %p264, %s25, 0
        %s266 = sadd.s32 %s265, %s263
        %s267 = sadd.s32 %s266, %s261
        %s268 = smul.addr %s267, 8
        %s269 = scalar_lea.vmem %s2, %s268
        %p270 = scmp.lt.s32.totalorder %s24, 1
        %s271 = scalar_select %p270, %s24, 1
        %p272 = scmp.lt.s32.totalorder %s25, 0
        %s273 = scalar_select %p272, %s25, 0
        %s274 = sadd.s32 %s273, %s271
        %s275 = scalar_lea.vmem %s3, %s274
        %p276 = scmp.eq.s32.totalorder %s26, 0
        // Predicated region
        $region41: #{tpu_custom_call.1} parent=35 // pred_check
          %p277 = pneg %p276
        $region42: #{tpu_custom_call.1} parent=35 // pred_check_branch
          %279 = sbr.rel (%p277) target = $region44
        $region43: #{tpu_custom_call.1} parent=35 // pred_region
          %v280 = vld [vmem:[%s275] sm:$0x1]
          %vm281 = vcmask 253952
          %282 = vst.msk [vmem:[#allocation2] sm:$0x1] %vm281, %v280
        $region44: #{tpu_custom_call.1} parent=35 // pred_fallthru
          _
        %v283 = vld [vmem:[#allocation3] sm:$0xff]
        %v284 = vld [vmem:[%s269] sm:$0xff]
        %v285 = vld [vmem:[%s1] sm:$0xff]
        %v286 = vld [vmem:[#allocation2] sm:$0x1]
        %288 = vset.pattern.permute.xlu0 0
        %289 = vperm.xlu0 %288, %v285
        %v290 = vpop.permute.xlu0 %289
        %v293 = vlaneseq
        %v294 = vshrl.u32 %v293, 7
        %v295 = vsub.s32 0, %v294
        %v296 = vrot.slane %v286, %v295
        %v298 = vmul.f32 %v290, %v296
        %vm299 = vcmask 64512
        %v301 = vsel %vm299, %v283, 0
        %303 = vmatprep.subr.mxu0 0.0
        %v304 = vand.u32 %v284, 4294901760
        %305 = vmatpush1.msra.mxu0 %v304
        %306 = vmatprep.subr.mxu0 0.0
        %307 = vmatpush1.msra.mxu0 0.0
        %308 = vmatprep.subr.mxu0 0.0
        %309 = vmatpush1.msra.mxu0 0.0
        %310 = vmatprep.subr.mxu0 0.0
        %311 = vmatpush1.msra.mxu0 0.0
        %312 = vmatprep.subr.mxu0 0.0
        %313 = vmatpush1.msra.mxu0 0.0
        %314 = vmatprep.subr.mxu0 0.0
        %315 = vmatpush1.msra.mxu0 0.0
        %316 = vmatprep.subr.mxu0 0.0
        %317 = vmatpush1.msra.mxu0 0.0
        %318 = vmatprep.subr.mxu0 0.0
        %319 = vmatpush1.msra.mxu0 0.0
        %320 = vmatprep.subr.mxu0 0.0
        %321 = vmatpush1.msra.mxu0 0.0
        %322 = vmatprep.subr.mxu0 0.0
        %323 = vmatpush1.msra.mxu0 0.0
        %324 = vmatprep.subr.mxu0 0.0
        %325 = vmatpush1.msra.mxu0 0.0
        %326 = vmatprep.subr.mxu0 0.0
        %327 = vmatpush1.msra.mxu0 0.0
        %328 = vmatprep.subr.mxu0 0.0
        %329 = vmatpush1.msra.mxu0 0.0
        %330 = vmatprep.subr.mxu0 0.0
        %331 = vmatpush1.msra.mxu0 0.0
        %332 = vmatprep.subr.mxu0 0.0
        %333 = vmatpush1.msra.mxu0 0.0
        %334 = vmatprep.subr.mxu0 0.0
        %335 = vmatpush1.msra.mxu0 0.0
        %336 = vmatprep.subr.mxu0 0.0
        %337 = vmatpush1.msra.mxu0 0.0
        %338 = vmatprep.subr.mxu0 0.0
        %339 = vmatpush1.msra.mxu0 0.0
        %340 = vmatprep.subr.mxu0 0.0
        %341 = vmatpush1.msra.mxu0 0.0
        %342 = vmatprep.subr.mxu0 0.0
        %343 = vmatpush1.msra.mxu0 0.0
        %344 = vmatprep.subr.mxu0 0.0
        %345 = vmatpush1.msra.mxu0 0.0
        %346 = vmatprep.subr.mxu0 0.0
        %347 = vmatpush1.msra.mxu0 0.0
        %348 = vmatprep.subr.mxu0 0.0
        %349 = vmatpush1.msra.mxu0 0.0
        %350 = vmatprep.subr.mxu0 0.0
        %351 = vmatpush1.msra.mxu0 0.0
        %352 = vmatprep.subr.mxu0 0.0
        %353 = vmatpush1.msra.mxu0 0.0
        %354 = vmatprep.subr.mxu0 0.0
        %355 = vmatpush1.msra.mxu0 0.0
        %356 = vmatprep.subr.mxu0 0.0
        %357 = vmatpush1.msra.mxu0 0.0
        %358 = vmatprep.subr.mxu0 0.0
        %359 = vmatpush1.msra.mxu0 0.0
        %360 = vmatprep.subr.mxu0 0.0
        %361 = vmatpush1.msra.mxu0 0.0
        %362 = vmatprep.subr.mxu0 0.0
        %363 = vmatpush1.msra.mxu0 0.0
        %364 = vmatprep.subr.mxu0 0.0
        %365 = vmatpush1.msra.mxu0 0.0
        %366 = vmatprep.subr.mxu0 0.0
        %367 = vmatpush1.msra.mxu0 0.0
        %368 = vmatprep.mubr.f32.mxu0 0.0
        %v369 = vand.u32 %v301, 4294901760
        %v370 = vsub.f32 %v301, %v369
        %v371 = vand.u32 %v370, 4294901760
        %v372 = vsub.f32 %v370, %v371
        %v373 = vand.u32 %v372, 4294901760
        %374 = vmatmul.mubr.f32.gmra.mrb[0].mxu0 %v373
        %v375 = vpop.f32.mrb[0].mxu0
        %v376 = vadd.f32 %v298, %v375
        %v377 = vpop.f32.mrb[0].mxu0
        %378 = vdwg.mxu0
        %379 = vmatprep.subr.mxu0 0.0
        %v380 = vand.u32 %v284, 4294901760
        %v381 = vsub.f32 %v284, %v380
        %v382 = vand.u32 %v381, 4294901760
        %v383 = vsub.f32 %v381, %v382
        %v384 = vand.u32 %v383, 4294901760
        %385 = vmatpush1.msra.mxu0 %v384
        %386 = vmatprep.subr.mxu0 0.0
        %387 = vmatpush1.msra.mxu0 0.0
        %388 = vmatprep.subr.mxu0 0.0
        %389 = vmatpush1.msra.mxu0 0.0
        %390 = vmatprep.subr.mxu0 0.0
        %391 = vmatpush1.msra.mxu0 0.0
        %392 = vmatprep.subr.mxu0 0.0
        %393 = vmatpush1.msra.mxu0 0.0
        %394 = vmatprep.subr.mxu0 0.0
        %395 = vmatpush1.msra.mxu0 0.0
        %396 = vmatprep.subr.mxu0 0.0
        %397 = vmatpush1.msra.mxu0 0.0
        %398 = vmatprep.subr.mxu0 0.0
        %399 = vmatpush1.msra.mxu0 0.0
        %400 = vmatprep.subr.mxu0 0.0
        %401 = vmatpush1.msra.mxu0 0.0
        %402 = vmatprep.subr.mxu0 0.0
        %403 = vmatpush1.msra.mxu0 0.0
        %404 = vmatprep.subr.mxu0 0.0
        %405 = vmatpush1.msra.mxu0 0.0
        %406 = vmatprep.subr.mxu0 0.0
        %407 = vmatpush1.msra.mxu0 0.0
        %408 = vmatprep.subr.mxu0 0.0
        %409 = vmatpush1.msra.mxu0 0.0
        %410 = vmatprep.subr.mxu0 0.0
        %411 = vmatpush1.msra.mxu0 0.0
        %412 = vmatprep.subr.mxu0 0.0
        %413 = vmatpush1.msra.mxu0 0.0
        %414 = vmatprep.subr.mxu0 0.0
        %415 = vmatpush1.msra.mxu0 0.0
        %416 = vmatprep.subr.mxu0 0.0
        %417 = vmatpush1.msra.mxu0 0.0
        %418 = vmatprep.subr.mxu0 0.0
        %419 = vmatpush1.msra.mxu0 0.0
        %420 = vmatprep.subr.mxu0 0.0
        %421 = vmatpush1.msra.mxu0 0.0
        %422 = vmatprep.subr.mxu0 0.0
        %423 = vmatpush1.msra.mxu0 0.0
        %424 = vmatprep.subr.mxu0 0.0
        %425 = vmatpush1.msra.mxu0 0.0
        %426 = vmatprep.subr.mxu0 0.0
        %427 = vmatpush1.msra.mxu0 0.0
        %428 = vmatprep.subr.mxu0 0.0
        %429 = vmatpush1.msra.mxu0 0.0
        %430 = vmatprep.subr.mxu0 0.0
        %431 = vmatpush1.msra.mxu0 0.0
        %432 = vmatprep.subr.mxu0 0.0
        %433 = vmatpush1.msra.mxu0 0.0
        %434 = vmatprep.subr.mxu0 0.0
        %435 = vmatpush1.msra.mxu0 0.0
        %436 = vmatprep.subr.mxu0 0.0
        %437 = vmatpush1.msra.mxu0 0.0
        %438 = vmatprep.subr.mxu0 0.0
        %439 = vmatpush1.msra.mxu0 0.0
        %440 = vmatprep.subr.mxu0 0.0
        %441 = vmatpush1.msra.mxu0 0.0
        %442 = vmatprep.subr.mxu0 0.0
        %443 = vmatpush1.msra.mxu0 0.0
        %444 = vmatprep.subr.mxu0 0.0
        %445 = vmatpush1.msra.mxu0 0.0
        %446 = vmatprep.subr.mxu0 0.0
        %447 = vmatpush1.msra.mxu0 0.0
        %448 = vmatprep.mubr.f32.mxu0 0.0
        %v449 = vand.u32 %v301, 4294901760
        %450 = vmatmul.mubr.f32.gmra.mrb[0].mxu0 %v449
        %v451 = vpop.f32.mrb[0].mxu0
        %v452 = vadd.f32 %v376, %v451
        %v453 = vpop.f32.mrb[0].mxu0
        %454 = vdwg.mxu0
        %455 = vmatprep.subr.mxu0 0.0
        %v456 = vand.u32 %v284, 4294901760
        %v457 = vsub.f32 %v284, %v456
        %458 = vmatpush1.msra.mxu0 %v457
        %459 = vmatprep.subr.mxu0 0.0
        %460 = vmatpush1.msra.mxu0 0.0
        %461 = vmatprep.subr.mxu0 0.0
        %462 = vmatpush1.msra.mxu0 0.0
        %463 = vmatprep.subr.mxu0 0.0
        %464 = vmatpush1.msra.mxu0 0.0
        %465 = vmatprep.subr.mxu0 0.0
        %466 = vmatpush1.msra.mxu0 0.0
        %467 = vmatprep.subr.mxu0 0.0
        %468 = vmatpush1.msra.mxu0 0.0
        %469 = vmatprep.subr.mxu0 0.0
        %470 = vmatpush1.msra.mxu0 0.0
        %471 = vmatprep.subr.mxu0 0.0
        %472 = vmatpush1.msra.mxu0 0.0
        %473 = vmatprep.subr.mxu0 0.0
        %474 = vmatpush1.msra.mxu0 0.0
        %475 = vmatprep.subr.mxu0 0.0
        %476 = vmatpush1.msra.mxu0 0.0
        %477 = vmatprep.subr.mxu0 0.0
        %478 = vmatpush1.msra.mxu0 0.0
        %479 = vmatprep.subr.mxu0 0.0
        %480 = vmatpush1.msra.mxu0 0.0
        %481 = vmatprep.subr.mxu0 0.0
        %482 = vmatpush1.msra.mxu0 0.0
        %483 = vmatprep.subr.mxu0 0.0
        %484 = vmatpush1.msra.mxu0 0.0
        %485 = vmatprep.subr.mxu0 0.0
        %486 = vmatpush1.msra.mxu0 0.0
        %487 = vmatprep.subr.mxu0 0.0
        %488 = vmatpush1.msra.mxu0 0.0
        %489 = vmatprep.subr.mxu0 0.0
        %490 = vmatpush1.msra.mxu0 0.0
        %491 = vmatprep.subr.mxu0 0.0
        %492 = vmatpush1.msra.mxu0 0.0
        %493 = vmatprep.subr.mxu0 0.0
        %494 = vmatpush1.msra.mxu0 0.0
        %495 = vmatprep.subr.mxu0 0.0
        %496 = vmatpush1.msra.mxu0 0.0
        %497 = vmatprep.subr.mxu0 0.0
        %498 = vmatpush1.msra.mxu0 0.0
        %499 = vmatprep.subr.mxu0 0.0
        %500 = vmatpush1.msra.mxu0 0.0
        %501 = vmatprep.subr.mxu0 0.0
        %502 = vmatpush1.msra.mxu0 0.0
        %503 = vmatprep.subr.mxu0 0.0
        %504 = vmatpush1.msra.mxu0 0.0
        %505 = vmatprep.subr.mxu0 0.0
        %506 = vmatpush1.msra.mxu0 0.0
        %507 = vmatprep.subr.mxu0 0.0
        %508 = vmatpush1.msra.mxu0 0.0
        %509 = vmatprep.subr.mxu0 0.0
        %510 = vmatpush1.msra.mxu0 0.0
        %511 = vmatprep.subr.mxu0 0.0
        %512 = vmatpush1.msra.mxu0 0.0
        %513 = vmatprep.subr.mxu0 0.0
        %514 = vmatpush1.msra.mxu0 0.0
        %515 = vmatprep.subr.mxu0 0.0
        %516 = vmatpush1.msra.mxu0 0.0
        %517 = vmatprep.subr.mxu0 0.0
        %518 = vmatpush1.msra.mxu0 0.0
        %519 = vmatprep.subr.mxu0 0.0
        %520 = vmatpush1.msra.mxu0 0.0
        %521 = vmatprep.mubr.f32.mxu0 0.0
        %v522 = vand.u32 %v301, 4294901760
        %v523 = vsub.f32 %v301, %v522
        %524 = vmatmul.mubr.f32.gmra.mrb[0].mxu0 %v523
        %v525 = vpop.f32.mrb[0].mxu0
        %v526 = vadd.f32 %v452, %v525
        %v527 = vpop.f32.mrb[0].mxu0
        %528 = vdwg.mxu0
        %529 = vmatprep.subr.mxu0 0.0
        %v530 = vand.u32 %v284, 4294901760
        %531 = vmatpush1.msra.mxu0 %v530
        %532 = vmatprep.subr.mxu0 0.0
        %533 = vmatpush1.msra.mxu0 0.0
        %534 = vmatprep.subr.mxu0 0.0
        %535 = vmatpush1.msra.mxu0 0.0
        %536 = vmatprep.subr.mxu0 0.0
        %537 = vmatpush1.msra.mxu0 0.0
        %538 = vmatprep.subr.mxu0 0.0
        %539 = vmatpush1.msra.mxu0 0.0
        %540 = vmatprep.subr.mxu0 0.0
        %541 = vmatpush1.msra.mxu0 0.0
        %542 = vmatprep.subr.mxu0 0.0
        %543 = vmatpush1.msra.mxu0 0.0
        %544 = vmatprep.subr.mxu0 0.0
        %545 = vmatpush1.msra.mxu0 0.0
        %546 = vmatprep.subr.mxu0 0.0
        %547 = vmatpush1.msra.mxu0 0.0
        %548 = vmatprep.subr.mxu0 0.0
        %549 = vmatpush1.msra.mxu0 0.0
        %550 = vmatprep.subr.mxu0 0.0
        %551 = vmatpush1.msra.mxu0 0.0
        %552 = vmatprep.subr.mxu0 0.0
        %553 = vmatpush1.msra.mxu0 0.0
        %554 = vmatprep.subr.mxu0 0.0
        %555 = vmatpush1.msra.mxu0 0.0
        %556 = vmatprep.subr.mxu0 0.0
        %557 = vmatpush1.msra.mxu0 0.0
        %558 = vmatprep.subr.mxu0 0.0
        %559 = vmatpush1.msra.mxu0 0.0
        %560 = vmatprep.subr.mxu0 0.0
        %561 = vmatpush1.msra.mxu0 0.0
        %562 = vmatprep.subr.mxu0 0.0
        %563 = vmatpush1.msra.mxu0 0.0
        %564 = vmatprep.subr.mxu0 0.0
        %565 = vmatpush1.msra.mxu0 0.0
        %566 = vmatprep.subr.mxu0 0.0
        %567 = vmatpush1.msra.mxu0 0.0
        %568 = vmatprep.subr.mxu0 0.0
        %569 = vmatpush1.msra.mxu0 0.0
        %570 = vmatprep.subr.mxu0 0.0
        %571 = vmatpush1.msra.mxu0 0.0
        %572 = vmatprep.subr.mxu0 0.0
        %573 = vmatpush1.msra.mxu0 0.0
        %574 = vmatprep.subr.mxu0 0.0
        %575 = vmatpush1.msra.mxu0 0.0
        %576 = vmatprep.subr.mxu0 0.0
        %577 = vmatpush1.msra.mxu0 0.0
        %578 = vmatprep.subr.mxu0 0.0
        %579 = vmatpush1.msra.mxu0 0.0
        %580 = vmatprep.subr.mxu0 0.0
        %581 = vmatpush1.msra.mxu0 0.0
        %582 = vmatprep.subr.mxu0 0.0
        %583 = vmatpush1.msra.mxu0 0.0
        %584 = vmatprep.subr.mxu0 0.0
        %585 = vmatpush1.msra.mxu0 0.0
        %586 = vmatprep.subr.mxu0 0.0
        %587 = vmatpush1.msra.mxu0 0.0
        %588 = vmatprep.subr.mxu0 0.0
        %589 = vmatpush1.msra.mxu0 0.0
        %590 = vmatprep.subr.mxu0 0.0
        %591 = vmatpush1.msra.mxu0 0.0
        %592 = vmatprep.subr.mxu0 0.0
        %593 = vmatpush1.msra.mxu0 0.0
        %594 = vmatprep.mubr.f32.mxu0 0.0
        %v595 = vand.u32 %v301, 4294901760
        %v596 = vsub.f32 %v301, %v595
        %v597 = vand.u32 %v596, 4294901760
        %598 = vmatmul.mubr.f32.gmra.mrb[0].mxu0 %v597
        %v599 = vpop.f32.mrb[0].mxu0
        %v600 = vadd.f32 %v526, %v599
        %v601 = vpop.f32.mrb[0].mxu0
        %602 = vdwg.mxu0
        %603 = vmatprep.subr.mxu0 0.0
        %v604 = vand.u32 %v284, 4294901760
        %v605 = vsub.f32 %v284, %v604
        %v606 = vand.u32 %v605, 4294901760
        %607 = vmatpush1.msra.mxu0 %v606
        %608 = vmatprep.subr.mxu0 0.0
        %609 = vmatpush1.msra.mxu0 0.0
        %610 = vmatprep.subr.mxu0 0.0
        %611 = vmatpush1.msra.mxu0 0.0
        %612 = vmatprep.subr.mxu0 0.0
        %613 = vmatpush1.msra.mxu0 0.0
        %614 = vmatprep.subr.mxu0 0.0
        %615 = vmatpush1.msra.mxu0 0.0
        %616 = vmatprep.subr.mxu0 0.0
        %617 = vmatpush1.msra.mxu0 0.0
        %618 = vmatprep.subr.mxu0 0.0
        %619 = vmatpush1.msra.mxu0 0.0
        %620 = vmatprep.subr.mxu0 0.0
        %621 = vmatpush1.msra.mxu0 0.0
        %622 = vmatprep.subr.mxu0 0.0
        %623 = vmatpush1.msra.mxu0 0.0
        %624 = vmatprep.subr.mxu0 0.0
        %625 = vmatpush1.msra.mxu0 0.0
        %626 = vmatprep.subr.mxu0 0.0
        %627 = vmatpush1.msra.mxu0 0.0
        %628 = vmatprep.subr.mxu0 0.0
        %629 = vmatpush1.msra.mxu0 0.0
        %630 = vmatprep.subr.mxu0 0.0
        %631 = vmatpush1.msra.mxu0 0.0
        %632 = vmatprep.subr.mxu0 0.0
        %633 = vmatpush1.msra.mxu0 0.0
        %634 = vmatprep.subr.mxu0 0.0
        %635 = vmatpush1.msra.mxu0 0.0
        %636 = vmatprep.subr.mxu0 0.0
        %637 = vmatpush1.msra.mxu0 0.0
        %638 = vmatprep.subr.mxu0 0.0
        %639 = vmatpush1.msra.mxu0 0.0
        %640 = vmatprep.subr.mxu0 0.0
        %641 = vmatpush1.msra.mxu0 0.0
        %642 = vmatprep.subr.mxu0 0.0
        %643 = vmatpush1.msra.mxu0 0.0
        %644 = vmatprep.subr.mxu0 0.0
        %645 = vmatpush1.msra.mxu0 0.0
        %646 = vmatprep.subr.mxu0 0.0
        %647 = vmatpush1.msra.mxu0 0.0
        %648 = vmatprep.subr.mxu0 0.0
        %649 = vmatpush1.msra.mxu0 0.0
        %650 = vmatprep.subr.mxu0 0.0
        %651 = vmatpush1.msra.mxu0 0.0
        %652 = vmatprep.subr.mxu0 0.0
        %653 = vmatpush1.msra.mxu0 0.0
        %654 = vmatprep.subr.mxu0 0.0
        %655 = vmatpush1.msra.mxu0 0.0
        %656 = vmatprep.subr.mxu0 0.0
        %657 = vmatpush1.msra.mxu0 0.0
        %658 = vmatprep.subr.mxu0 0.0
        %659 = vmatpush1.msra.mxu0 0.0
        %660 = vmatprep.subr.mxu0 0.0
        %661 = vmatpush1.msra.mxu0 0.0
        %662 = vmatprep.subr.mxu0 0.0
        %663 = vmatpush1.msra.mxu0 0.0
        %664 = vmatprep.subr.mxu0 0.0
        %665 = vmatpush1.msra.mxu0 0.0
        %666 = vmatprep.subr.mxu0 0.0
        %667 = vmatpush1.msra.mxu0 0.0
        %668 = vmatprep.subr.mxu0 0.0
        %669 = vmatpush1.msra.mxu0 0.0
        %670 = vmatprep.mubr.f32.mxu0 0.0
        %v671 = vand.u32 %v301, 4294901760
        %672 = vmatmul.mubr.f32.gmra.mrb[0].mxu0 %v671
        %v673 = vpop.f32.mrb[0].mxu0
        %v674 = vadd.f32 %v600, %v673
        %v675 = vpop.f32.mrb[0].mxu0
        %676 = vdwg.mxu0
        %677 = vmatprep.subr.mxu0 0.0
        %v678 = vand.u32 %v284, 4294901760
        %679 = vmatpush1.msra.mxu0 %v678
        %680 = vmatprep.subr.mxu0 0.0
        %681 = vmatpush1.msra.mxu0 0.0
        %682 = vmatprep.subr.mxu0 0.0
        %683 = vmatpush1.msra.mxu0 0.0
        %684 = vmatprep.subr.mxu0 0.0
        %685 = vmatpush1.msra.mxu0 0.0
        %686 = vmatprep.subr.mxu0 0.0
        %687 = vmatpush1.msra.mxu0 0.0
        %688 = vmatprep.subr.mxu0 0.0
        %689 = vmatpush1.msra.mxu0 0.0
        %690 = vmatprep.subr.mxu0 0.0
        %691 = vmatpush1.msra.mxu0 0.0
        %692 = vmatprep.subr.mxu0 0.0
        %693 = vmatpush1.msra.mxu0 0.0
        %694 = vmatprep.subr.mxu0 0.0
        %695 = vmatpush1.msra.mxu0 0.0
        %696 = vmatprep.subr.mxu0 0.0
        %697 = vmatpush1.msra.mxu0 0.0
        %698 = vmatprep.subr.mxu0 0.0
        %699 = vmatpush1.msra.mxu0 0.0
        %700 = vmatprep.subr.mxu0 0.0
        %701 = vmatpush1.msra.mxu0 0.0
        %702 = vmatprep.subr.mxu0 0.0
        %703 = vmatpush1.msra.mxu0 0.0
        %704 = vmatprep.subr.mxu0 0.0
        %705 = vmatpush1.msra.mxu0 0.0
        %706 = vmatprep.subr.mxu0 0.0
        %707 = vmatpush1.msra.mxu0 0.0
        %708 = vmatprep.subr.mxu0 0.0
        %709 = vmatpush1.msra.mxu0 0.0
        %710 = vmatprep.subr.mxu0 0.0
        %711 = vmatpush1.msra.mxu0 0.0
        %712 = vmatprep.subr.mxu0 0.0
        %713 = vmatpush1.msra.mxu0 0.0
        %714 = vmatprep.subr.mxu0 0.0
        %715 = vmatpush1.msra.mxu0 0.0
        %716 = vmatprep.subr.mxu0 0.0
        %717 = vmatpush1.msra.mxu0 0.0
        %718 = vmatprep.subr.mxu0 0.0
        %719 = vmatpush1.msra.mxu0 0.0
        %720 = vmatprep.subr.mxu0 0.0
        %721 = vmatpush1.msra.mxu0 0.0
        %722 = vmatprep.subr.mxu0 0.0
        %723 = vmatpush1.msra.mxu0 0.0
        %724 = vmatprep.subr.mxu0 0.0
        %725 = vmatpush1.msra.mxu0 0.0
        %726 = vmatprep.subr.mxu0 0.0
        %727 = vmatpush1.msra.mxu0 0.0
        %728 = vmatprep.subr.mxu0 0.0
        %729 = vmatpush1.msra.mxu0 0.0
        %730 = vmatprep.subr.mxu0 0.0
        %731 = vmatpush1.msra.mxu0 0.0
        %732 = vmatprep.subr.mxu0 0.0
        %733 = vmatpush1.msra.mxu0 0.0
        %734 = vmatprep.subr.mxu0 0.0
        %735 = vmatpush1.msra.mxu0 0.0
        %736 = vmatprep.subr.mxu0 0.0
        %737 = vmatpush1.msra.mxu0 0.0
        %738 = vmatprep.subr.mxu0 0.0
        %739 = vmatpush1.msra.mxu0 0.0
        %740 = vmatprep.subr.mxu0 0.0
        %741 = vmatpush1.msra.mxu0 0.0
        %742 = vmatprep.mubr.f32.mxu0 0.0
        %v743 = vand.u32 %v301, 4294901760
        %744 = vmatmul.mubr.f32.gmra.mrb[0].mxu0 %v743
        %v745 = vpop.f32.mrb[0].mxu0
        %v746 = vadd.f32 %v674, %v745
        %v747 = vpop.f32.mrb[0].mxu0
        %748 = vdwg.mxu0
        %vm749 = vcmask 261120
        %750 = vst.msk [vmem:[%s259] sm:$0xff] %vm749, %v746
        %vm751 = vcmask 261127
        %752 = vst.msk [vmem:[#allocation2 - $0x7] sm:$0x80] %vm751, %v746
        %s753 = sand.u32 %s150, 1
        %s754 = scalar_lea.sflag [#allocation5], %s753
        %s755 = sand.u32 %s150, 1
        %s756 = smul.addr %s755, 8
        %s757 = scalar_lea.vmem [#allocation6], %s756
        // Predicated region
        $region45: #{tpu_custom_call.1} parent=35 // pred_check
          %p758 = pneg %p160
        $region46: #{tpu_custom_call.1} parent=35 // pred_check_branch
          %760 = sbr.rel (%p758) target = $region48
        $region47: #{tpu_custom_call.1} parent=35 // pred_region
          %s762 = ssub.s32 128, 128
          %763 = vsyncadd %s754, %s762
          %s764 = sadd.s32 %s25, %s26
          %s765 = sadd.s32 %s764, %s24
          %s766 = smul.addr %s765, 128
          %s767 = scalar_lea.hbm %s4, %s766
          %s769 = sshll.u32 %s757, 4
          %s770 = int_to_ptr.vmem [resolvable:$true] %s769
          %772 = dma.vmem_to_hbm [thread:$0]  %s770, 128, %s767, %s754
        $region48: #{tpu_custom_call.1} parent=35 // pred_fallthru
          _
      $region36: #{tpu_custom_call.1} parent=5 // pred_fallthru
        _
      %p773 = scmp.le.s32.totalorder 2, %s14
      // Predicated region
      $region49: #{tpu_custom_call.1} parent=5 // pred_check
        %p774 = pneg %p773
      $region50: #{tpu_custom_call.1} parent=5 // pred_check_branch
        %776 = sbr.rel (%p774) target = $region52
      $region51: #{tpu_custom_call.1} parent=5 // pred_region
        %s777 = ssub.s32 %s14, 2
        // Predicated region
        $region53: #{tpu_custom_call.1} parent=51 // pred_check
          %p778 = pneg %p166
        $region54: #{tpu_custom_call.1} parent=51 // pred_check_branch
          %780 = sbr.rel (%p778) target = $region56
        $region55: #{tpu_custom_call.1} parent=51 // pred_region
          %s781 = sand.u32 %s151, 1
          %s782 = scalar_lea.sflag [#allocation5], %s781
          %s783 = sand.u32 %s151, 1
          %s784 = smul.addr %s783, 8
          %s785 = scalar_lea.vmem [#allocation6], %s784
          %786 = dma.done %s782, 128
        $region56: #{tpu_custom_call.1} parent=51 // pred_fallthru
          _
      $region52: #{tpu_custom_call.1} parent=5 // pred_fallthru
        _
    $region6: #{tpu_custom_call.1} parent=1 // loop_footer
      %s18 = sadd.s32 1, %s14
    $region7: #{tpu_custom_call.1} parent=1 // loop_footer_branch
      %13 = sbr.rel target = $region3
    $region8: #{tpu_custom_call.1} parent=1 // loop_exit
      _
    %787 = vsyncpa [#allocation4], 1
    %s788 = scalar_lea.sflag [#allocation4], 1
    %789 = vsyncpa %s788, 1
    %790 = vsyncpa [#allocation5], 1
    %s791 = scalar_lea.sflag [#allocation5], 1
    %792 = vsyncpa %s791, 1

</llo_original>
